<compile_context>
chip_gen: v6e
topology: v6e:2x2x1
jax: 0.10.0
libtpu: 0.0.40
codegen_flags: <defaults>
</compile_context>

<pallas_src>
import jax
import jax.numpy as jnp
from jax.experimental import pallas as pl
from jax.experimental.pallas import tpu as pltpu

PAD = 3            # ReplicationPad3d(3): pad 3 on both sides of D, H, W.
_TARGET_STEPS = 8  # aim for ~8-16 grid steps so the DMA pipeline overlaps.

# Per-grid-step budget for (input block + output block) in *physical* bytes.
# With 2x double-buffering plus in-kernel temporaries the peak live VMEM stays
# around ~12 MiB: safe under v5e's 16 MiB scoped default and v7x's 64 MiB VMEM.
_BLOCK_BUDGET = 4 * 1024 * 1024


def _round_up(n, m):
    return ((n + m - 1) // m) * m


def _phys_bytes(shape, itemsize):
    """Physical VMEM bytes of a block: minor two dims padded to (8, 128)."""
    lead = 1
    for d in shape[:-2]:
        lead *= d
    return lead * _round_up(shape[-2], 8) * _round_up(shape[-1], 128) * itemsize


def _pad_hw(x):
    """Edge-pad the last two (sublane, lane) dims of x by PAD on each side."""
    *lead, H, W = x.shape
    lead = tuple(lead)
    P = PAD
    # W (lane axis): replicate first/last column P times each side.
    w_lo = jnp.broadcast_to(x[..., :1], lead + (H, P))
    w_hi = jnp.broadcast_to(x[..., W - 1:], lead + (H, P))
    xw = jnp.concatenate([w_lo, x, w_hi], axis=-1)            # (..., H, W+2P)
    Wo = W + 2 * P
    # H (sublane axis): replicate first/last row P times each side.
    h_lo = jnp.broadcast_to(xw[..., :1, :], lead + (P, Wo))
    h_hi = jnp.broadcast_to(xw[..., H - 1:, :], lead + (P, Wo))
    return jnp.concatenate([h_lo, xw, h_hi], axis=-2)         # (..., H+2P, W+2P)


def _pad3d_full_kernel(x_ref, o_ref):
    """Full-volume path: block (tb, D, H, W) -> (tb, D+2P, H+2P, W+2P)."""
    x = x_ref[...]
    tb, D, H, W = x.shape
    P = PAD
    xh = _pad_hw(x)                                           # (tb, D, Ho, Wo)
    Ho, Wo = xh.shape[-2], xh.shape[-1]
    # D interior: one large contiguous store (no output-sized concat temporary).
    o_ref[:, P:P + D] = xh
    # D faces: replicate the first / last padded slice P times.
    o_ref[:, :P] = jnp.broadcast_to(xh[:, :1], (tb, P, Ho, Wo))
    o_ref[:, P + D:] = jnp.broadcast_to(xh[:, D - 1:], (tb, P, Ho, Wo))


def _pad_hw_slice_kernel(x_ref, o_ref):
    """Per-D-slice path: D replication is handled by the clamped input index_map."""
    o_ref[...] = _pad_hw(x_ref[...])


def replication_pad3d(x, *, force_slice_path=False):
    """x: (N, C, D, H, W) float32 -> (N, C, D+6, H+6, W+6) edge-padded."""
    N, C, D, H, W = x.shape
    P = PAD
    Do, Ho, Wo = D + 2 * P, H + 2 * P, W + 2 * P
    B = N * C
    xb = x.reshape(B, D, H, W)

    itemsize = jnp.dtype(x.dtype).itemsize
    in_item = _phys_bytes((D, H, W), itemsize)
    out_item = _phys_bytes((Do, Ho, Wo), itemsize)

    # Pure-bandwidth op: tell XLA's scheduler so surrounding ops can overlap.
    cost = pl.CostEstimate(
        flops=0,
        transcendentals=0,
        bytes_accessed=(B * D * H * W + B * Do * Ho * Wo) * itemsize,
    )

    use_full = (in_item + out_item <= _BLOCK_BUDGET) and not force_slice_path

    if use_full:
        # ---- Path 1: whole (D, H, W) volume per block, grid over the batch. ----
        per_item = in_item + out_item
        tb = min(_BLOCK_BUDGET // per_item, max(1, B // _TARGET_STEPS))
        if B >= 2:
            tb = min(tb, (B + 1) // 2)   # keep >= 2 grid steps (v7x: 2 TCs, DMA overlap)
        tb = max(1, tb)
        nb = -(-B // tb)
        Bp = nb * tb
        if Bp != B:                      # no divisor constraint: pad batch, slice later
            xb = jnp.pad(xb, ((0, Bp - B), (0, 0), (0, 0), (0, 0)))

        out = pl.pallas_call(
            _pad3d_full_kernel,
            out_shape=jax.ShapeDtypeStruct((Bp, Do, Ho, Wo), x.dtype),
            grid_spec=pltpu.PrefetchScalarGridSpec(
                num_scalar_prefetch=0,
                grid=(nb,),
                in_specs=[pl.BlockSpec((tb, D, H, W), lambda i: (i, 0, 0, 0))],
                out_specs=pl.BlockSpec((tb, Do, Ho, Wo), lambda i: (i, 0, 0, 0)),
            ),
            compiler_params=pltpu.CompilerParams(
                dimension_semantics=("parallel",)),
            cost_estimate=cost,
        )(xb)
    else:
        # ---- Path 2: one output-D slice per block; clamped index_map gives the ----
        # ---- replicated D faces for free (Pallas skips re-fetch on repeat blocks).
        per_item = (_phys_bytes((1, H, W), itemsize)
                    + _phys_bytes((1, Ho, Wo), itemsize))
        # TODO(synk): if a single (H, W) slice still exceeds the budget, tile H too.
        tb = max(1, _BLOCK_BUDGET // per_item)
        if B >= 2:
            tb = min(tb, (B + 1) // 2)
        tb = max(1, tb)
        nb = -(-B // tb)
        Bp = nb * tb
        if Bp != B:
            xb = jnp.pad(xb, ((0, Bp - B), (0, 0), (0, 0), (0, 0)))

        out = pl.pallas_call(
            _pad_hw_slice_kernel,
            out_shape=jax.ShapeDtypeStruct((Bp, Do, Ho, Wo), x.dtype),
            grid_spec=pltpu.PrefetchScalarGridSpec(
                num_scalar_prefetch=0,
                grid=(nb, Do),
                in_specs=[pl.BlockSpec(
                    (tb, 1, H, W),
                    lambda i, d: (i, jnp.maximum(jnp.minimum(d - P, D - 1), 0), 0, 0))],
                out_specs=pl.BlockSpec((tb, 1, Ho, Wo), lambda i, d: (i, d, 0, 0)),
            ),
            compiler_params=pltpu.CompilerParams(
                dimension_semantics=("parallel", "arbitrary")),
            cost_estimate=cost,
        )(xb)

    if Bp != B:
        out = out[:B]
    return out.reshape(N, C, Do, Ho, Wo)


if __name__ == "__main__":
    key = jax.random.PRNGKey(0)
    # Small NCDHW shape consistent with the module's [-1,-1,-1,-1,-1] float32 signature.
    x = jax.random.normal(key, (2, 3, 5, 6, 7), dtype=jnp.float32)

    ref = jnp.pad(
        x, ((0, 0), (0, 0), (PAD, PAD), (PAD, PAD), (PAD, PAD)), mode="edge"
    )

    # Default (full-volume) path.
    out = jax.block_until_ready(replication_pad3d(x))
    assert out.shape == (2, 3, 11, 12, 13), out.shape
    assert jnp.array_equal(out, ref), "full-volume path mismatch vs reference"

    # Also exercise the large-volume per-D-slice path (clamped index_map).
    out2 = jax.block_until_ready(replication_pad3d(x, force_slice_path=True))
    assert jnp.array_equal(out2, ref), "per-slice path mismatch vs reference"

    print("KERNEL_OK")
</pallas_src>

<mosaic_0001>
module attributes {stable_mosaic.version = 11 : i64} {
  func.func @_pad3d_full_kernel(%arg0: i32, %arg1: memref<1x5x6x7xf32, #tpu.memory_space<vmem>>, %arg2: memref<1x11x12x13xf32, #tpu.memory_space<vmem>>) attributes {dimension_semantics = [#tpu.dimension_semantics<parallel>], iteration_bounds = array<i64: 6>, scalar_prefetch = 0 : i64, scratch_operands = 0 : i64, tpu.core_type = #tpu.core_type<tc>, window_params = [{transform_indices = @transform_0, window_bounds = array<i64: 1, 5, 6, 7>}, {transform_indices = @transform_1, window_bounds = array<i64: 1, 11, 12, 13>}]} {
    %c0 = arith.constant 0 : index
    %c0_0 = arith.constant 0 : index
    %c0_1 = arith.constant 0 : index
    %c0_2 = arith.constant 0 : index
    %0 = vector.load %arg1[%c0, %c0_0, %c0_1, %c0_2] : memref<1x5x6x7xf32, #tpu.memory_space<vmem>>, vector<1x5x6x7xf32>
    %1 = vector.extract_strided_slice %0 {offsets = [0, 0, 0, 0], sizes = [1, 5, 6, 1], strides = [1, 1, 1, 1]} : vector<1x5x6x7xf32> to vector<1x5x6x1xf32>
    %2 = vector.shape_cast %1 : vector<1x5x6x1xf32> to vector<1x5x6x1xf32>
    %3 = vector.broadcast %2 : vector<1x5x6x1xf32> to vector<1x5x6x3xf32>
    %4 = vector.extract_strided_slice %0 {offsets = [0, 0, 0, 6], sizes = [1, 5, 6, 1], strides = [1, 1, 1, 1]} : vector<1x5x6x7xf32> to vector<1x5x6x1xf32>
    %5 = vector.shape_cast %4 : vector<1x5x6x1xf32> to vector<1x5x6x1xf32>
    %6 = vector.broadcast %5 : vector<1x5x6x1xf32> to vector<1x5x6x3xf32>
    %7 = tpu.concatenate %3, %0, %6 in 3 : vector<1x5x6x3xf32>, vector<1x5x6x7xf32>, vector<1x5x6x3xf32> -> vector<1x5x6x13xf32>
    %8 = vector.extract_strided_slice %7 {offsets = [0, 0, 0, 0], sizes = [1, 5, 1, 13], strides = [1, 1, 1, 1]} : vector<1x5x6x13xf32> to vector<1x5x1x13xf32>
    %9 = vector.shape_cast %8 : vector<1x5x1x13xf32> to vector<1x5x1x13xf32>
    %10 = vector.broadcast %9 : vector<1x5x1x13xf32> to vector<1x5x3x13xf32>
    %11 = vector.extract_strided_slice %7 {offsets = [0, 0, 5, 0], sizes = [1, 5, 1, 13], strides = [1, 1, 1, 1]} : vector<1x5x6x13xf32> to vector<1x5x1x13xf32>
    %12 = vector.shape_cast %11 : vector<1x5x1x13xf32> to vector<1x5x1x13xf32>
    %13 = vector.broadcast %12 : vector<1x5x1x13xf32> to vector<1x5x3x13xf32>
    %14 = tpu.concatenate %10, %7, %13 in 2 : vector<1x5x3x13xf32>, vector<1x5x6x13xf32>, vector<1x5x3x13xf32> -> vector<1x5x12x13xf32>
    %c0_3 = arith.constant 0 : index
    %c3 = arith.constant 3 : index
    %c0_4 = arith.constant 0 : index
    %c0_5 = arith.constant 0 : index
    %15 = vector.load %arg2[%c0_3, %c3, %c0_4, %c0_5] : memref<1x11x12x13xf32, #tpu.memory_space<vmem>>, vector<1x5x12x13xf32>
    tpu.vector_store %arg2[%c0_3, %c3, %c0_4, %c0_5], %14 {strides = array<i32>} : memref<1x11x12x13xf32, #tpu.memory_space<vmem>>, vector<1x5x12x13xf32>,
    %16 = vector.extract_strided_slice %14 {offsets = [0, 0, 0, 0], sizes = [1, 1, 12, 13], strides = [1, 1, 1, 1]} : vector<1x5x12x13xf32> to vector<1x1x12x13xf32>
    %17 = vector.shape_cast %16 : vector<1x1x12x13xf32> to vector<1x1x12x13xf32>
    %18 = vector.broadcast %17 : vector<1x1x12x13xf32> to vector<1x3x12x13xf32>
    %c0_6 = arith.constant 0 : index
    %c0_7 = arith.constant 0 : index
    %c0_8 = arith.constant 0 : index
    %c0_9 = arith.constant 0 : index
    %19 = vector.load %arg2[%c0_6, %c0_7, %c0_8, %c0_9] : memref<1x11x12x13xf32, #tpu.memory_space<vmem>>, vector<1x3x12x13xf32>
    tpu.vector_store %arg2[%c0_6, %c0_7, %c0_8, %c0_9], %18 {strides = array<i32>} : memref<1x11x12x13xf32, #tpu.memory_space<vmem>>, vector<1x3x12x13xf32>,
    %20 = vector.extract_strided_slice %14 {offsets = [0, 4, 0, 0], sizes = [1, 1, 12, 13], strides = [1, 1, 1, 1]} : vector<1x5x12x13xf32> to vector<1x1x12x13xf32>
    %21 = vector.shape_cast %20 : vector<1x1x12x13xf32> to vector<1x1x12x13xf32>
    %22 = vector.broadcast %21 : vector<1x1x12x13xf32> to vector<1x3x12x13xf32>
    %c0_10 = arith.constant 0 : index
    %c8 = arith.constant 8 : index
    %c0_11 = arith.constant 0 : index
    %c0_12 = arith.constant 0 : index
    %23 = vector.load %arg2[%c0_10, %c8, %c0_11, %c0_12] : memref<1x11x12x13xf32, #tpu.memory_space<vmem>>, vector<1x3x12x13xf32>
    tpu.vector_store %arg2[%c0_10, %c8, %c0_11, %c0_12], %22 {strides = array<i32>} : memref<1x11x12x13xf32, #tpu.memory_space<vmem>>, vector<1x3x12x13xf32>,
    return
  }
  func.func @transform_0(%arg0: i32) -> (i32, i32, i32, i32) {
    %c0_i32 = arith.constant 0 : i32
    %c0_i32_0 = arith.constant 0 : i32
    %c0_i32_1 = arith.constant 0 : i32
    %c0_i32_2 = arith.constant 0 : i32
    return %arg0, %c0_i32, %c0_i32_0, %c0_i32_1 : i32, i32, i32, i32
  }
  func.func @transform_1(%arg0: i32) -> (i32, i32, i32, i32) {
    %c0_i32 = arith.constant 0 : i32
    %c0_i32_0 = arith.constant 0 : i32
    %c0_i32_1 = arith.constant 0 : i32
    %c0_i32_2 = arith.constant 0 : i32
    return %arg0, %c0_i32, %c0_i32_0, %c0_i32_1 : i32, i32, i32, i32
  }
}

</mosaic_0001>

<llo_original>
// kernel: tpu_custom_call.1
$region0: #{tpu_custom_call.1}
  #allocation0 [shape = 'u32[]', space=smem, size = 0x4, offset = 0x4, fixed_abs, tag = 'smem constant byte address 0x4 - core index']
  #allocation1 [shape = 'u32[144,128]{1,0:T(1,128)}', space=vmem, size = 0x12000, scoped, tag = 'internal scratch']
  %s0 = inlined_call_operand.hbm [shape: f32[6,5,6,7], index: 0, kind: input, shape index: {}]
  %s1 = inlined_call_operand.hbm [shape: f32[6,11,12,13], index: 1, kind: output, shape index: {}]
  %s2 = sld [smem:[#allocation0]]
  $region41: #{tpu_custom_call.1} parent=0
    _
  %s4 = ssub.s32 1, %s2
  %s5 = scalar_select 0, %s4, %s2
  $region1: #{tpu_custom_call.1} parent=0
    #allocation2 [shape = 'u8[40960]{0}', space=vmem, size = 0xa000, scoped, tag = 'input window, operand 0']
    #allocation3 [shape = 's32[2]{0}', space=sflag, size = 0x8, scoped, tag = 'scoped memory for tpu_custom_call.1']
    #allocation4 [shape = 's32[2]{0}', space=sflag, size = 0x8, scoped, tag = 'scoped memory for tpu_custom_call.1']
    #allocation5 [shape = 'u8[180224]{0}', space=vmem, size = 0x2c000, scoped, tag = 'output window, operand 0']
    %6 = vsyncpa [#allocation3], 0
    %s7 = scalar_lea.sflag [#allocation3], 1
    %8 = vsyncpa %s7, 0
    %9 = vsyncpa [#allocation4], 0
    %s10 = scalar_lea.sflag [#allocation4], 1
    %11 = vsyncpa %s10, 0
    loop: start=0, step=1, limit=8
    $region2: #{tpu_custom_call.1} parent=1 // loop_pre_header
      _
    $region3: #{tpu_custom_call.1} parent=1 // loop_header
      %s13 = sphi 0, %s17
      %p14 = scmp.ge.s32.totalorder %s13, 8
      %s23 = sphi 0, %s25
      %s26 = sphi 0, %s23
      %s27 = sphi 0, %s26
      %s43 = sphi 0, %s27
      %s49 = sphi 0, %s51
      %s52 = sphi 0, %s49
      %s53 = sphi 0, %s52
      %s69 = sphi 0, %s53
    $region4: #{tpu_custom_call.1} parent=1 // loop_header_branch
      %16 = sbr.rel (%p14) target = $region8
    $region5: #{tpu_custom_call.1} parent=1 // loop_body
      %s18 = ssub.s32 %s13, 1
      %s19 = ssub.s32 %s13, 2
      %s20 = sadd.s32 %s13, 1
      %s21 = ssub.s32 %s13, %s20
      %p22 = scmp.eq.s32.totalorder %s21, 0
      %s24 = sadd.s32 %s23, 1
      %s25 = scalar_select %p22, %s23, %s24
      %p28 = pneg %p22
      %p29 = scmp.eq.s32.totalorder %s13, 5
      %p30 = por %p28, %p29
      %p31 = scmp.ne.s32.totalorder %s23, %s26
      %p32 = scmp.eq.s32.totalorder %s13, 0
      %p33 = por %p31, %p32
      %p34 = scmp.ne.s32.totalorder %s23, %s26
      %p35 = scmp.eq.s32.totalorder %s18, 5
      %p36 = por %p34, %p35
      %p37 = scmp.ne.s32.totalorder %s26, %s27
      %p38 = scmp.eq.s32.totalorder %s18, 0
      %p39 = por %p37, %p38
      %p40 = scmp.ne.s32.totalorder %s26, %s27
      %p41 = scmp.eq.s32.totalorder %s19, 5
      %p42 = por %p40, %p41
      %p44 = scmp.ne.s32.totalorder %s27, %s43
      %p45 = scmp.eq.s32.totalorder %s19, 0
      %p46 = por %p44, %p45
      %s47 = ssub.s32 %s13, %s20
      %p48 = scmp.eq.s32.totalorder %s47, 0
      %s50 = sadd.s32 %s49, 1
      %s51 = scalar_select %p48, %s49, %s50
      %p54 = pneg %p48
      %p55 = scmp.eq.s32.totalorder %s13, 5
      %p56 = por %p54, %p55
      %p57 = scmp.ne.s32.totalorder %s49, %s52
      %p58 = scmp.eq.s32.totalorder %s13, 0
      %p59 = por %p57, %p58
      %p60 = scmp.ne.s32.totalorder %s49, %s52
      %p61 = scmp.eq.s32.totalorder %s18, 5
      %p62 = por %p60, %p61
      %p63 = scmp.ne.s32.totalorder %s52, %s53
      %p64 = scmp.eq.s32.totalorder %s18, 0
      %p65 = por %p63, %p64
      %p66 = scmp.ne.s32.totalorder %s52, %s53
      %p67 = scmp.eq.s32.totalorder %s19, 5
      %p68 = por %p66, %p67
      %p70 = scmp.ne.s32.totalorder %s53, %s69
      %p71 = scmp.eq.s32.totalorder %s19, 0
      %p72 = por %p70, %p71
      %p73 = scmp.le.s32.totalorder 1, %s13
      %p74 = scmp.lt.s32.totalorder %s13, 7
      %p75 = pnand %p73, %p74
      %p76 = pneg %p75
      // Predicated region
      $region9: #{tpu_custom_call.1} parent=5 // pred_check
        _
      $region10: #{tpu_custom_call.1} parent=5 // pred_check_branch
        %78 = sbr.rel (%p75) target = $region12
      $region11: #{tpu_custom_call.1} parent=5 // pred_region
        %s79 = ssub.s32 %s13, 1
      $region12: #{tpu_custom_call.1} parent=5 // pred_fallthru
        _
      %p80 = scmp.lt.s32.totalorder %s13, 6
      // Predicated region
      $region13: #{tpu_custom_call.1} parent=5 // pred_check
        %p81 = pneg %p80
      $region14: #{tpu_custom_call.1} parent=5 // pred_check_branch
        %83 = sbr.rel (%p81) target = $region16
      $region15: #{tpu_custom_call.1} parent=5 // pred_region
        // Predicated region
        $region17: #{tpu_custom_call.1} parent=15 // pred_check
          %p84 = pneg %p33
        $region18: #{tpu_custom_call.1} parent=15 // pred_check_branch
          %86 = sbr.rel (%p84) target = $region20
        $region19: #{tpu_custom_call.1} parent=15 // pred_region
          %s87 = sand.u32 %s23, 1
          %s88 = scalar_lea.sflag [#allocation3], %s87
          %s89 = sand.u32 %s23, 1
          %s90 = smul.addr %s89, 40
          %s91 = scalar_lea.vmem [#allocation2], %s90
          %s93 = ssub.s32 640, 640
          %94 = vsyncadd %s88, %s93
          %s95 = smul.addr %s13, 5
          %s96 = smul.addr %s95, 128
          %s97 = scalar_lea.hbm %s0, %s96
          %s98 = sshll.u32 %s91, 4
          %s99 = int_to_ptr.vmem [resolvable:$true] %s98
          %104 = dma.hbm_to_vmem [thread:$0]  %s97, 640, %s99, %s88, 128, 128, 8
        $region20: #{tpu_custom_call.1} parent=15 // pred_fallthru
          _
      $region16: #{tpu_custom_call.1} parent=5 // pred_fallthru
        _
      %p105 = scmp.le.s32.totalorder 1, %s13
      %p106 = scmp.lt.s32.totalorder %s13, 7
      %p107 = pnand %p105, %p106
      %p108 = pneg %p107
      // Predicated region
      $region21: #{tpu_custom_call.1} parent=5 // pred_check
        _
      $region22: #{tpu_custom_call.1} parent=5 // pred_check_branch
        %110 = sbr.rel (%p107) target = $region24
      $region23: #{tpu_custom_call.1} parent=5 // pred_region
        %s111 = ssub.s32 %s13, 1
        %s112 = sand.u32 %s26, 1
        %s113 = scalar_lea.sflag [#allocation3], %s112
        %s114 = sand.u32 %s26, 1
        %s115 = smul.addr %s114, 40
        %s116 = scalar_lea.vmem [#allocation2], %s115
        // Predicated region
        $region25: #{tpu_custom_call.1} parent=23 // pred_check
          %p117 = pneg %p39
        $region26: #{tpu_custom_call.1} parent=23 // pred_check_branch
          %119 = sbr.rel (%p117) target = $region28
        $region27: #{tpu_custom_call.1} parent=23 // pred_region
          %120 = dma.done %s113, 640
        $region28: #{tpu_custom_call.1} parent=23 // pred_fallthru
          _
        %s121 = sand.u32 %s26, 1
        %s122 = scalar_lea.sflag [#allocation3], %s121
        %s123 = sand.u32 %s26, 1
        %s124 = smul.addr %s123, 40
        %s125 = scalar_lea.vmem [#allocation2], %s124
        %p126 = pneg %p39
        %p127 = pneg %p36
        %p128 = pneg %p65
        %p129 = pneg %p62
        %s130 = sand.u32 %s52, 1
        %s131 = scalar_lea.sflag [#allocation4], %s130
        %s132 = sand.u32 %s52, 1
        %s133 = smul.addr %s132, 176
        %s134 = scalar_lea.vmem [#allocation5], %s133
        %v135 = vld [vmem:[%s116] sm:$0x3f]
        %v136 = vld [vmem:[%s116 + $0x8] sm:$0x3f]
        %v137 = vld [vmem:[%s116 + $0x10] sm:$0x3f]
        %v138 = vld [vmem:[%s116 + $0x18] sm:$0x3f]
        %v139 = vld [vmem:[%s116 + $0x20] sm:$0x3f]
        %141 = vset.pattern.permute.xlu0 0
        %142 = vperm.xlu0 %141, %v135
        %v143 = vpop.permute.xlu0 %142
        %146 = vset.pattern.permute.xlu0 0
        %147 = vperm.xlu0 %146, %v136
        %v148 = vpop.permute.xlu0 %147
        %151 = vset.pattern.permute.xlu0 0
        %152 = vperm.xlu0 %151, %v137
        %v153 = vpop.permute.xlu0 %152
        %156 = vset.pattern.permute.xlu0 0
        %157 = vperm.xlu0 %156, %v138
        %v158 = vpop.permute.xlu0 %157
        %161 = vset.pattern.permute.xlu0 0
        %162 = vperm.xlu0 %161, %v139
        %v163 = vpop.permute.xlu0 %162
        %165 = vset.pattern.permute.xlu0 6
        %166 = vperm.xlu0 %165, %v135
        %v167 = vpop.permute.xlu0 %166
        %169 = vset.pattern.permute.xlu0 6
        %170 = vperm.xlu0 %169, %v136
        %v171 = vpop.permute.xlu0 %170
        %173 = vset.pattern.permute.xlu0 6
        %174 = vperm.xlu0 %173, %v137
        %v175 = vpop.permute.xlu0 %174
        %177 = vset.pattern.permute.xlu0 6
        %178 = vperm.xlu0 %177, %v138
        %v179 = vpop.permute.xlu0 %178
        %181 = vset.pattern.permute.xlu0 6
        %182 = vperm.xlu0 %181, %v139
        %v183 = vpop.permute.xlu0 %182
        %185 = vrot.lane.b32.xlu0 %v135, 3
        %v186 = vpop.permute.xlu0 %185
        %187 = vrot.lane.b32.xlu0 %v136, 3
        %v188 = vpop.permute.xlu0 %187
        %189 = vrot.lane.b32.xlu0 %v137, 3
        %v190 = vpop.permute.xlu0 %189
        %191 = vrot.lane.b32.xlu0 %v138, 3
        %v192 = vpop.permute.xlu0 %191
        %193 = vrot.lane.b32.xlu0 %v139, 3
        %v194 = vpop.permute.xlu0 %193
        %vm200 = vcmask 23552
        %v201 = vsel %vm200, %v143, %v186
        %v202 = vsel %vm200, %v148, %v188
        %v203 = vsel %vm200, %v153, %v190
        %v204 = vsel %vm200, %v158, %v192
        %v205 = vsel %vm200, %v163, %v194
        %vm206 = vcmask 80896
        %v207 = vsel %vm206, %v201, %v167
        %v208 = vsel %vm206, %v202, %v171
        %v209 = vsel %vm206, %v203, %v175
        %v210 = vsel %vm206, %v204, %v179
        %v211 = vsel %vm206, %v205, %v183
        %v212 = vlaneseq
        %v213 = vshrl.u32 %v212, 7
        %v214 = vsub.s32 0, %v213
        %v215 = vrot.slane %v207, %v214
        %v216 = vlaneseq
        %v217 = vshrl.u32 %v216, 7
        %v218 = vsub.s32 0, %v217
        %v219 = vrot.slane %v208, %v218
        %v220 = vlaneseq
        %v221 = vshrl.u32 %v220, 7
        %v222 = vsub.s32 0, %v221
        %v223 = vrot.slane %v209, %v222
        %v224 = vlaneseq
        %v225 = vshrl.u32 %v224, 7
        %v226 = vsub.s32 0, %v225
        %v227 = vrot.slane %v210, %v226
        %v228 = vlaneseq
        %v229 = vshrl.u32 %v228, 7
        %v230 = vsub.s32 0, %v229
        %v231 = vrot.slane %v211, %v230
        %v232 = vlaneseq
        %v233 = vshrl.u32 %v232, 7
        %v234 = vsub.s32 5, %v233
        %v235 = vrot.slane %v207, %v234
        %v236 = vlaneseq
        %v237 = vshrl.u32 %v236, 7
        %v238 = vsub.s32 5, %v237
        %v239 = vrot.slane %v208, %v238
        %v240 = vlaneseq
        %v241 = vshrl.u32 %v240, 7
        %v242 = vsub.s32 5, %v241
        %v243 = vrot.slane %v209, %v242
        %v244 = vlaneseq
        %v245 = vshrl.u32 %v244, 7
        %v246 = vsub.s32 5, %v245
        %v247 = vrot.slane %v210, %v246
        %v248 = vlaneseq
        %v249 = vshrl.u32 %v248, 7
        %v250 = vsub.s32 5, %v249
        %v251 = vrot.slane %v211, %v250
        %v257 = vrot.slane %v207, 5
        %v258 = vrot.slane %v208, 5
        %v259 = vrot.slane %v209, 5
        %v260 = vrot.slane %v210, 5
        %v261 = vrot.slane %v211, 5
        %vm267 = vcmask 1042432
        %v268 = vsel %vm267, %v215, %v257
        %v269 = vsel %vm267, %v219, %v258
        %v270 = vsel %vm267, %v223, %v259
        %v271 = vsel %vm267, %v227, %v260
        %v272 = vsel %vm267, %v231, %v261
        %vm273 = vcmask 1040384
        %v274 = vsel %vm273, %v257, %v235
        %v275 = vsel %vm273, %v258, %v239
        %v276 = vsel %vm273, %v259, %v243
        %v277 = vsel %vm273, %v260, %v247
        %v278 = vsel %vm273, %v261, %v251
        %s279 = scalar_lea.vmem %s134, 48 [#allocation5]
        %vm280 = vcmask 105472
        %281 = vst.msk [vmem:[%s279] sm:$0xff] %vm280, %v268
        %vm282 = vcmask 101376
        %283 = vst.msk [vmem:[%s279 + $0x8] sm:$0xf] %vm282, %v274
        %284 = vst.msk [vmem:[%s279 + $0x10] sm:$0xff] %vm280, %v269
        %285 = vst.msk [vmem:[%s279 + $0x18] sm:$0xf] %vm282, %v275
        %286 = vst.msk [vmem:[%s279 + $0x20] sm:$0xff] %vm280, %v270
        %287 = vst.msk [vmem:[%s279 + $0x28] sm:$0xf] %vm282, %v276
        %288 = vst.msk [vmem:[%s279 + $0x30] sm:$0xff] %vm280, %v271
        %289 = vst.msk [vmem:[%s279 + $0x38] sm:$0xf] %vm282, %v277
        %290 = vst.msk [vmem:[%s279 + $0x40] sm:$0xff] %vm280, %v272
        %291 = vst.msk [vmem:[%s279 + $0x48] sm:$0xf] %vm282, %v278
        %292 = vst.msk [vmem:[%s134] sm:$0xff] %vm280, %v268
        %293 = vst.msk [vmem:[%s134 + $0x8] sm:$0xf] %vm282, %v274
        %294 = vst.msk [vmem:[%s134 + $0x10] sm:$0xff] %vm280, %v268
        %295 = vst.msk [vmem:[%s134 + $0x18] sm:$0xf] %vm282, %v274
        %296 = vst.msk [vmem:[%s134 + $0x20] sm:$0xff] %vm280, %v268
        %297 = vst.msk [vmem:[%s134 + $0x28] sm:$0xf] %vm282, %v274
        %s298 = scalar_lea.vmem %s134, 128 [#allocation5]
        %299 = vst.msk [vmem:[%s298] sm:$0xff] %vm280, %v272
        %300 = vst.msk [vmem:[%s298 + $0x8] sm:$0xf] %vm282, %v278
        %301 = vst.msk [vmem:[%s298 + $0x10] sm:$0xff] %vm280, %v272
        %302 = vst.msk [vmem:[%s298 + $0x18] sm:$0xf] %vm282, %v278
        %303 = vst.msk [vmem:[%s298 + $0x20] sm:$0xff] %vm280, %v272
        %304 = vst.msk [vmem:[%s298 + $0x28] sm:$0xf] %vm282, %v278
        %s305 = sand.u32 %s52, 1
        %s306 = scalar_lea.sflag [#allocation4], %s305
        %s307 = sand.u32 %s52, 1
        %s308 = smul.addr %s307, 176
        %s309 = scalar_lea.vmem [#allocation5], %s308
        // Predicated region
        $region29: #{tpu_custom_call.1} parent=23 // pred_check
          %p310 = pneg %p62
        $region30: #{tpu_custom_call.1} parent=23 // pred_check_branch
          %312 = sbr.rel (%p310) target = $region32
        $region31: #{tpu_custom_call.1} parent=23 // pred_region
          %s314 = ssub.s32 2816, 2816
          %315 = vsyncadd %s306, %s314
          %s316 = smul.addr %s18, 22
          %s317 = smul.addr %s316, 128
          %s318 = scalar_lea.hbm %s1, %s317
          %s319 = sshll.u32 %s309, 4
          %s320 = int_to_ptr.vmem [resolvable:$true] %s319
          %325 = dma.vmem_to_hbm [thread:$0]  %s320, 2816, %s318, %s306, 128, 128, 8
        $region32: #{tpu_custom_call.1} parent=23 // pred_fallthru
          _
      $region24: #{tpu_custom_call.1} parent=5 // pred_fallthru
        _
      %p326 = scmp.le.s32.totalorder 2, %s13
      // Predicated region
      $region33: #{tpu_custom_call.1} parent=5 // pred_check
        %p327 = pneg %p326
      $region34: #{tpu_custom_call.1} parent=5 // pred_check_branch
        %329 = sbr.rel (%p327) target = $region36
      $region35: #{tpu_custom_call.1} parent=5 // pred_region
        %s330 = ssub.s32 %s13, 2
        // Predicated region
        $region37: #{tpu_custom_call.1} parent=35 // pred_check
          %p331 = pneg %p68
        $region38: #{tpu_custom_call.1} parent=35 // pred_check_branch
          %333 = sbr.rel (%p331) target = $region40
        $region39: #{tpu_custom_call.1} parent=35 // pred_region
          %s334 = sand.u32 %s53, 1
          %s335 = scalar_lea.sflag [#allocation4], %s334
          %s336 = sand.u32 %s53, 1
          %s337 = smul.addr %s336, 176
          %s338 = scalar_lea.vmem [#allocation5], %s337
          %339 = dma.done %s335, 2816
        $region40: #{tpu_custom_call.1} parent=35 // pred_fallthru
          _
      $region36: #{tpu_custom_call.1} parent=5 // pred_fallthru
        _
    $region6: #{tpu_custom_call.1} parent=1 // loop_footer
      %s17 = sadd.s32 1, %s13
    $region7: #{tpu_custom_call.1} parent=1 // loop_footer_branch
      %12 = sbr.rel target = $region3
    $region8: #{tpu_custom_call.1} parent=1 // loop_exit
      _
    %340 = vsyncpa [#allocation3], 1
    %s341 = scalar_lea.sflag [#allocation3], 1
    %342 = vsyncpa %s341, 1
    %343 = vsyncpa [#allocation4], 1
    %s344 = scalar_lea.sflag [#allocation4], 1
    %345 = vsyncpa %s344, 1

</llo_original>
